<compile_context>
chip_gen: v5e
topology: v5e:2x2
jax: 0.10.0
libtpu: 0.0.40
codegen_flags: <defaults>
</compile_context>

<pallas_src>
import functools

import jax
import jax.numpy as jnp
from jax import lax
from jax.experimental import pallas as pl
from jax.experimental.pallas import tpu as pltpu


def _dwsep_kernel(x_ref, wf_ref, o_ref, *, th, w, c, cout):
    """One (batch, row-tile) grid step.

    x_ref : (th+2, w+2, c)   zero-padded NHWC input rows for this tile (input dtype)
    wf_ref: (3, 3, cout, c)  fused depthwise*pointwise weights (input dtype)
    o_ref : (cout, th*w)     NCHW-flat output tile (lane-dense: th*w % 128 == 0)
    """
    acc = jnp.zeros((cout, th * w), jnp.float32)
    for kh in range(3):
        for kw in range(3):
            # Shifted (th, w, c) view of the padded tile; the reshape keeps C on
            # lanes and is layout-preserving because w % 8 == 0.
            xs = x_ref[kh:kh + th, kw:kw + w, :].reshape(th * w, c)
            # (cout, c) . (th*w, c)^T -> (cout, th*w): MXU, f32 accumulation.
            acc = acc + lax.dot_general(
                wf_ref[kh, kw], xs,
                dimension_numbers=(((1,), (1,)), ((), ())),
                preferred_element_type=jnp.float32)
    o_ref[...] = acc.astype(o_ref.dtype)


def _choose_row_tile(h, w8, c, cout, itemsize, budget_bytes=2 << 20):
    """Largest row tile TH dividing H with a lane-aligned flattened output
    (TH*W % 128 == 0) and a small double-buffered VMEM footprint; prefers
    TH < H so the row axis of the grid actually pipelines."""
    def tile_bytes(th):
        in_b = (th + 2) * (w8 + 2) * c * itemsize
        out_b = cout * th * w8 * itemsize
        return 2 * (in_b + out_b)          # double-buffered input + output blocks
    divisors = [d for d in range(1, h + 1) if h % d == 0]
    cands = [d for d in divisors
             if (d * w8) % 128 == 0 and tile_bytes(d) <= budget_bytes]
    proper = [d for d in cands if d < h]
    if proper:
        return max(proper)
    if cands:
        return max(cands)
    return h   # whole image per step: blocks equal full dims, always legal.


@jax.jit
def depthwise_separable_conv(x_nchw, dw_oihw, pw_oihw):
    """x_nchw: (N, C, H, W); dw_oihw: (C, 1, 3, 3); pw_oihw: (Cout, C, 1, 1)."""
    n, c, h, w = x_nchw.shape
    cout = pw_oihw.shape[0]
    idt = x_nchw.dtype
    isz = jnp.dtype(idt).itemsize

    # Pad W up to a multiple of 8 (sublane count) so the in-kernel reshape is
    # layout-preserving; extra columns are zeros and get sliced off at the end.
    w8 = -(-w // 8) * 8

    # Layout glue (pure data movement, fuses on the XLA side): NCHW -> NHWC,
    # 1-pixel halo pad, and the overlapping row-tile gather. The kernel then
    # streams each tile exactly once.
    x_nhwc = jnp.transpose(x_nchw, (0, 2, 3, 1))
    x_pad = jnp.pad(x_nhwc, ((0, 0), (1, 1), (1, w8 - w + 1), (0, 0)))

    th = _choose_row_tile(h, w8, c, cout, isz)
    t = h // th

    rows = (jnp.arange(t) * th)[:, None] + jnp.arange(th + 2)[None, :]
    x_tiles = x_pad[:, rows]                                   # (N, T, TH+2, W8+2, C)

    # Fuse depthwise and pointwise weights: wf[kh, kw, co, c] = dw[kh,kw,c]*pw[co,c].
    dwk = jnp.transpose(dw_oihw.reshape(c, 3, 3), (1, 2, 0))   # (3, 3, C)
    pwk = pw_oihw.reshape(cout, c)                             # (Cout, C)
    wf = (dwk[:, :, None, :] * pwk[None, None, :, :]).astype(idt)   # (3, 3, Cout, C)

    # Explicit VMEM budget: double-buffered in/out blocks + weights + headroom.
    in_blk = (th + 2) * (w8 + 2) * c * isz
    out_blk = cout * th * w8 * isz
    wf_b = 9 * cout * c * isz
    vmem_limit = int(min(64 * 2**20,
                         max(4 * 2**20, 4 * (in_blk + out_blk) + wf_b + (1 << 20))))

    flops = 2 * n * t * th * w8 * 9 * c * cout
    bytes_accessed = (n * t * (th + 2) * (w8 + 2) * c + 9 * cout * c
                      + n * cout * h * w8) * isz

    kernel = functools.partial(_dwsep_kernel, th=th, w=w8, c=c, cout=cout)
    out_flat = pl.pallas_call(
        kernel,
        out_shape=jax.ShapeDtypeStruct((n, cout, h * w8), idt),
        grid=(n, t),
        in_specs=[
            pl.BlockSpec((None, None, th + 2, w8 + 2, c),
                         lambda i, j: (i, j, 0, 0, 0)),
            pl.BlockSpec((3, 3, cout, c), lambda i, j: (0, 0, 0, 0)),
        ],
        out_specs=pl.BlockSpec((None, cout, th * w8), lambda i, j: (i, 0, j)),
        compiler_params=pltpu.CompilerParams(
            dimension_semantics=("parallel", "parallel"),
            vmem_limit_bytes=vmem_limit),
        cost_estimate=pl.CostEstimate(
            flops=flops, transcendentals=0, bytes_accessed=bytes_accessed),
    )(x_tiles, wf)

    # Output is already NCHW-ordered: reshape is free; drop any W padding columns.
    out = out_flat.reshape(n, cout, h, w8)
    return out[:, :, :, :w] if w8 != w else out


def _reference(x_nchw, dw_oihw, pw_oihw):
    c = x_nchw.shape[1]
    dn = lax.conv_dimension_numbers(x_nchw.shape, dw_oihw.shape,
                                    ("NCHW", "OIHW", "NCHW"))
    dw_out = lax.conv_general_dilated(
        x_nchw, dw_oihw, window_strides=(1, 1), padding=((1, 1), (1, 1)),
        dimension_numbers=dn, feature_group_count=c)
    dn2 = lax.conv_dimension_numbers(dw_out.shape, pw_oihw.shape,
                                     ("NCHW", "OIHW", "NCHW"))
    return lax.conv_general_dilated(
        dw_out, pw_oihw, window_strides=(1, 1), padding="VALID",
        dimension_numbers=dn2)


if __name__ == "__main__":
    key = jax.random.PRNGKey(0)
    k_x, k_dw, k_pw = jax.random.split(key, 3)

    N, C_in, H, W = 2, 4, 16, 16
    C_out = 8

    x = jax.random.normal(k_x, (N, C_in, H, W), jnp.float32)
    # Deterministic synthetic weights (PyTorch nn.Conv2d weight shapes).
    dw = jax.random.normal(k_dw, (C_in, 1, 3, 3), jnp.float32) * 0.2
    pw = jax.random.normal(k_pw, (C_out, C_in, 1, 1), jnp.float32) * 0.2

    out = jax.block_until_ready(depthwise_separable_conv(x, dw, pw))
    ref = jax.block_until_ready(_reference(x, dw, pw))

    assert out.shape == (N, C_out, H, W), out.shape
    # f32 MXU accumulation vs XLA's conv reference: allow small rounding slack.
    assert jnp.allclose(out, ref, atol=1e-3, rtol=1e-3), "mismatch vs lax.conv reference"

    print("KERNEL_OK")
</pallas_src>

<mosaic_0001>
module attributes {stable_mosaic.version = 11 : i64} {
  func.func @_dwsep_kernel(%arg0: i32, %arg1: i32, %arg2: memref<1x1x10x18x4xf32, #tpu.memory_space<vmem>>, %arg3: memref<3x3x8x4xf32, #tpu.memory_space<vmem>>, %arg4: memref<1x8x128xf32, #tpu.memory_space<vmem>>) attributes {dimension_semantics = [#tpu.dimension_semantics<parallel>, #tpu.dimension_semantics<parallel>], iteration_bounds = array<i64: 2, 2>, scalar_prefetch = 0 : i64, scratch_operands = 0 : i64, tpu.core_type = #tpu.core_type<tc>, window_params = [{transform_indices = @transform_0, window_bounds = array<i64: 1, 1, 10, 18, 4>}, {pipeline_mode = #tpu.pipeline_mode<synchronous>, transform_indices = @transform_1, window_bounds = array<i64: 3, 3, 8, 4>}, {transform_indices = @transform_2, window_bounds = array<i64: 1, 8, 128>}]} {
    %cst = arith.constant 0.000000e+00 : f32
    %0 = vector.broadcast %cst : f32 to vector<8x128xf32>
    %c0 = arith.constant 0 : index
    %c0_0 = arith.constant 0 : index
    %c0_1 = arith.constant 0 : index
    %c0_2 = arith.constant 0 : index
    %c0_3 = arith.constant 0 : index
    %1 = vector.load %arg2[%c0, %c0_0, %c0_1, %c0_2, %c0_3] : memref<1x1x10x18x4xf32, #tpu.memory_space<vmem>>, vector<1x1x8x16x4xf32>
    %2 = vector.shape_cast %1 : vector<1x1x8x16x4xf32> to vector<8x16x4xf32>
    %3 = vector.shape_cast %2 : vector<8x16x4xf32> to vector<128x4xf32>
    %c0_4 = arith.constant 0 : index
    %c0_5 = arith.constant 0 : index
    %c0_6 = arith.constant 0 : index
    %c0_7 = arith.constant 0 : index
    %4 = vector.load %arg3[%c0_4, %c0_5, %c0_6, %c0_7] : memref<3x3x8x4xf32, #tpu.memory_space<vmem>>, vector<1x1x8x4xf32>
    %5 = vector.shape_cast %4 : vector<1x1x8x4xf32> to vector<8x4xf32>
    %cst_8 = arith.constant dense<0.000000e+00> : vector<8x128xf32>
    %6 = tpu.matmul %5, %3, %cst_8 {dimension_numbers = #tpu.dot_dimension_numbers<[1], [1], [0], [0], [0, 0, 1, 0], [], []>} : vector<8x4xf32>, vector<128x4xf32>, vector<8x128xf32> -> vector<8x128xf32>
    %7 = arith.addf %0, %6 : vector<8x128xf32>
    %c0_9 = arith.constant 0 : index
    %c0_10 = arith.constant 0 : index
    %c0_11 = arith.constant 0 : index
    %c1 = arith.constant 1 : index
    %c0_12 = arith.constant 0 : index
    %8 = vector.load %arg2[%c0_9, %c0_10, %c0_11, %c1, %c0_12] : memref<1x1x10x18x4xf32, #tpu.memory_space<vmem>>, vector<1x1x8x16x4xf32>
    %9 = vector.shape_cast %8 : vector<1x1x8x16x4xf32> to vector<8x16x4xf32>
    %10 = vector.shape_cast %9 : vector<8x16x4xf32> to vector<128x4xf32>
    %c0_13 = arith.constant 0 : index
    %c1_14 = arith.constant 1 : index
    %c0_15 = arith.constant 0 : index
    %c0_16 = arith.constant 0 : index
    %11 = vector.load %arg3[%c0_13, %c1_14, %c0_15, %c0_16] : memref<3x3x8x4xf32, #tpu.memory_space<vmem>>, vector<1x1x8x4xf32>
    %12 = vector.shape_cast %11 : vector<1x1x8x4xf32> to vector<8x4xf32>
    %cst_17 = arith.constant dense<0.000000e+00> : vector<8x128xf32>
    %13 = tpu.matmul %12, %10, %cst_17 {dimension_numbers = #tpu.dot_dimension_numbers<[1], [1], [0], [0], [0, 0, 1, 0], [], []>} : vector<8x4xf32>, vector<128x4xf32>, vector<8x128xf32> -> vector<8x128xf32>
    %14 = arith.addf %7, %13 : vector<8x128xf32>
    %c0_18 = arith.constant 0 : index
    %c0_19 = arith.constant 0 : index
    %c0_20 = arith.constant 0 : index
    %c2 = arith.constant 2 : index
    %c0_21 = arith.constant 0 : index
    %15 = vector.load %arg2[%c0_18, %c0_19, %c0_20, %c2, %c0_21] : memref<1x1x10x18x4xf32, #tpu.memory_space<vmem>>, vector<1x1x8x16x4xf32>
    %16 = vector.shape_cast %15 : vector<1x1x8x16x4xf32> to vector<8x16x4xf32>
    %17 = vector.shape_cast %16 : vector<8x16x4xf32> to vector<128x4xf32>
    %c0_22 = arith.constant 0 : index
    %c2_23 = arith.constant 2 : index
    %c0_24 = arith.constant 0 : index
    %c0_25 = arith.constant 0 : index
    %18 = vector.load %arg3[%c0_22, %c2_23, %c0_24, %c0_25] : memref<3x3x8x4xf32, #tpu.memory_space<vmem>>, vector<1x1x8x4xf32>
    %19 = vector.shape_cast %18 : vector<1x1x8x4xf32> to vector<8x4xf32>
    %cst_26 = arith.constant dense<0.000000e+00> : vector<8x128xf32>
    %20 = tpu.matmul %19, %17, %cst_26 {dimension_numbers = #tpu.dot_dimension_numbers<[1], [1], [0], [0], [0, 0, 1, 0], [], []>} : vector<8x4xf32>, vector<128x4xf32>, vector<8x128xf32> -> vector<8x128xf32>
    %21 = arith.addf %14, %20 : vector<8x128xf32>
    %c0_27 = arith.constant 0 : index
    %c0_28 = arith.constant 0 : index
    %c1_29 = arith.constant 1 : index
    %c0_30 = arith.constant 0 : index
    %c0_31 = arith.constant 0 : index
    %22 = vector.load %arg2[%c0_27, %c0_28, %c1_29, %c0_30, %c0_31] : memref<1x1x10x18x4xf32, #tpu.memory_space<vmem>>, vector<1x1x8x16x4xf32>
    %23 = vector.shape_cast %22 : vector<1x1x8x16x4xf32> to vector<8x16x4xf32>
    %24 = vector.shape_cast %23 : vector<8x16x4xf32> to vector<128x4xf32>
    %c1_32 = arith.constant 1 : index
    %c0_33 = arith.constant 0 : index
    %c0_34 = arith.constant 0 : index
    %c0_35 = arith.constant 0 : index
    %25 = vector.load %arg3[%c1_32, %c0_33, %c0_34, %c0_35] : memref<3x3x8x4xf32, #tpu.memory_space<vmem>>, vector<1x1x8x4xf32>
    %26 = vector.shape_cast %25 : vector<1x1x8x4xf32> to vector<8x4xf32>
    %cst_36 = arith.constant dense<0.000000e+00> : vector<8x128xf32>
    %27 = tpu.matmul %26, %24, %cst_36 {dimension_numbers = #tpu.dot_dimension_numbers<[1], [1], [0], [0], [0, 0, 1, 0], [], []>} : vector<8x4xf32>, vector<128x4xf32>, vector<8x128xf32> -> vector<8x128xf32>
    %28 = arith.addf %21, %27 : vector<8x128xf32>
    %c0_37 = arith.constant 0 : index
    %c0_38 = arith.constant 0 : index
    %c1_39 = arith.constant 1 : index
    %c1_40 = arith.constant 1 : index
    %c0_41 = arith.constant 0 : index
    %29 = vector.load %arg2[%c0_37, %c0_38, %c1_39, %c1_40, %c0_41] : memref<1x1x10x18x4xf32, #tpu.memory_space<vmem>>, vector<1x1x8x16x4xf32>
    %30 = vector.shape_cast %29 : vector<1x1x8x16x4xf32> to vector<8x16x4xf32>
    %31 = vector.shape_cast %30 : vector<8x16x4xf32> to vector<128x4xf32>
    %c1_42 = arith.constant 1 : index
    %c1_43 = arith.constant 1 : index
    %c0_44 = arith.constant 0 : index
    %c0_45 = arith.constant 0 : index
    %32 = vector.load %arg3[%c1_42, %c1_43, %c0_44, %c0_45] : memref<3x3x8x4xf32, #tpu.memory_space<vmem>>, vector<1x1x8x4xf32>
    %33 = vector.shape_cast %32 : vector<1x1x8x4xf32> to vector<8x4xf32>
    %cst_46 = arith.constant dense<0.000000e+00> : vector<8x128xf32>
    %34 = tpu.matmul %33, %31, %cst_46 {dimension_numbers = #tpu.dot_dimension_numbers<[1], [1], [0], [0], [0, 0, 1, 0], [], []>} : vector<8x4xf32>, vector<128x4xf32>, vector<8x128xf32> -> vector<8x128xf32>
    %35 = arith.addf %28, %34 : vector<8x128xf32>
    %c0_47 = arith.constant 0 : index
    %c0_48 = arith.constant 0 : index
    %c1_49 = arith.constant 1 : index
    %c2_50 = arith.constant 2 : index
    %c0_51 = arith.constant 0 : index
    %36 = vector.load %arg2[%c0_47, %c0_48, %c1_49, %c2_50, %c0_51] : memref<1x1x10x18x4xf32, #tpu.memory_space<vmem>>, vector<1x1x8x16x4xf32>
    %37 = vector.shape_cast %36 : vector<1x1x8x16x4xf32> to vector<8x16x4xf32>
    %38 = vector.shape_cast %37 : vector<8x16x4xf32> to vector<128x4xf32>
    %c1_52 = arith.constant 1 : index
    %c2_53 = arith.constant 2 : index
    %c0_54 = arith.constant 0 : index
    %c0_55 = arith.constant 0 : index
    %39 = vector.load %arg3[%c1_52, %c2_53, %c0_54, %c0_55] : memref<3x3x8x4xf32, #tpu.memory_space<vmem>>, vector<1x1x8x4xf32>
    %40 = vector.shape_cast %39 : vector<1x1x8x4xf32> to vector<8x4xf32>
    %cst_56 = arith.constant dense<0.000000e+00> : vector<8x128xf32>
    %41 = tpu.matmul %40, %38, %cst_56 {dimension_numbers = #tpu.dot_dimension_numbers<[1], [1], [0], [0], [0, 0, 1, 0], [], []>} : vector<8x4xf32>, vector<128x4xf32>, vector<8x128xf32> -> vector<8x128xf32>
    %42 = arith.addf %35, %41 : vector<8x128xf32>
    %c0_57 = arith.constant 0 : index
    %c0_58 = arith.constant 0 : index
    %c2_59 = arith.constant 2 : index
    %c0_60 = arith.constant 0 : index
    %c0_61 = arith.constant 0 : index
    %43 = vector.load %arg2[%c0_57, %c0_58, %c2_59, %c0_60, %c0_61] : memref<1x1x10x18x4xf32, #tpu.memory_space<vmem>>, vector<1x1x8x16x4xf32>
    %44 = vector.shape_cast %43 : vector<1x1x8x16x4xf32> to vector<8x16x4xf32>
    %45 = vector.shape_cast %44 : vector<8x16x4xf32> to vector<128x4xf32>
    %c2_62 = arith.constant 2 : index
    %c0_63 = arith.constant 0 : index
    %c0_64 = arith.constant 0 : index
    %c0_65 = arith.constant 0 : index
    %46 = vector.load %arg3[%c2_62, %c0_63, %c0_64, %c0_65] : memref<3x3x8x4xf32, #tpu.memory_space<vmem>>, vector<1x1x8x4xf32>
    %47 = vector.shape_cast %46 : vector<1x1x8x4xf32> to vector<8x4xf32>
    %cst_66 = arith.constant dense<0.000000e+00> : vector<8x128xf32>
    %48 = tpu.matmul %47, %45, %cst_66 {dimension_numbers = #tpu.dot_dimension_numbers<[1], [1], [0], [0], [0, 0, 1, 0], [], []>} : vector<8x4xf32>, vector<128x4xf32>, vector<8x128xf32> -> vector<8x128xf32>
    %49 = arith.addf %42, %48 : vector<8x128xf32>
    %c0_67 = arith.constant 0 : index
    %c0_68 = arith.constant 0 : index
    %c2_69 = arith.constant 2 : index
    %c1_70 = arith.constant 1 : index
    %c0_71 = arith.constant 0 : index
    %50 = vector.load %arg2[%c0_67, %c0_68, %c2_69, %c1_70, %c0_71] : memref<1x1x10x18x4xf32, #tpu.memory_space<vmem>>, vector<1x1x8x16x4xf32>
    %51 = vector.shape_cast %50 : vector<1x1x8x16x4xf32> to vector<8x16x4xf32>
    %52 = vector.shape_cast %51 : vector<8x16x4xf32> to vector<128x4xf32>
    %c2_72 = arith.constant 2 : index
    %c1_73 = arith.constant 1 : index
    %c0_74 = arith.constant 0 : index
    %c0_75 = arith.constant 0 : index
    %53 = vector.load %arg3[%c2_72, %c1_73, %c0_74, %c0_75] : memref<3x3x8x4xf32, #tpu.memory_space<vmem>>, vector<1x1x8x4xf32>
    %54 = vector.shape_cast %53 : vector<1x1x8x4xf32> to vector<8x4xf32>
    %cst_76 = arith.constant dense<0.000000e+00> : vector<8x128xf32>
    %55 = tpu.matmul %54, %52, %cst_76 {dimension_numbers = #tpu.dot_dimension_numbers<[1], [1], [0], [0], [0, 0, 1, 0], [], []>} : vector<8x4xf32>, vector<128x4xf32>, vector<8x128xf32> -> vector<8x128xf32>
    %56 = arith.addf %49, %55 : vector<8x128xf32>
    %c0_77 = arith.constant 0 : index
    %c0_78 = arith.constant 0 : index
    %c2_79 = arith.constant 2 : index
    %c2_80 = arith.constant 2 : index
    %c0_81 = arith.constant 0 : index
    %57 = vector.load %arg2[%c0_77, %c0_78, %c2_79, %c2_80, %c0_81] : memref<1x1x10x18x4xf32, #tpu.memory_space<vmem>>, vector<1x1x8x16x4xf32>
    %58 = vector.shape_cast %57 : vector<1x1x8x16x4xf32> to vector<8x16x4xf32>
    %59 = vector.shape_cast %58 : vector<8x16x4xf32> to vector<128x4xf32>
    %c2_82 = arith.constant 2 : index
    %c2_83 = arith.constant 2 : index
    %c0_84 = arith.constant 0 : index
    %c0_85 = arith.constant 0 : index
    %60 = vector.load %arg3[%c2_82, %c2_83, %c0_84, %c0_85] : memref<3x3x8x4xf32, #tpu.memory_space<vmem>>, vector<1x1x8x4xf32>
    %61 = vector.shape_cast %60 : vector<1x1x8x4xf32> to vector<8x4xf32>
    %cst_86 = arith.constant dense<0.000000e+00> : vector<8x128xf32>
    %62 = tpu.matmul %61, %59, %cst_86 {dimension_numbers = #tpu.dot_dimension_numbers<[1], [1], [0], [0], [0, 0, 1, 0], [], []>} : vector<8x4xf32>, vector<128x4xf32>, vector<8x128xf32> -> vector<8x128xf32>
    %63 = arith.addf %56, %62 : vector<8x128xf32>
    %c0_87 = arith.constant 0 : index
    %c0_88 = arith.constant 0 : index
    %c0_89 = arith.constant 0 : index
    %64 = vector.load %arg4[%c0_87, %c0_88, %c0_89] : memref<1x8x128xf32, #tpu.memory_space<vmem>>, vector<1x8x128xf32>
    %65 = vector.shape_cast %64 : vector<1x8x128xf32> to vector<8x128xf32>
    %66 = vector.shape_cast %63 : vector<8x128xf32> to vector<1x8x128xf32>
    tpu.vector_store %arg4[%c0_87, %c0_88, %c0_89], %66 {strides = array<i32>} : memref<1x8x128xf32, #tpu.memory_space<vmem>>, vector<1x8x128xf32>,
    return
  }
  func.func @transform_0(%arg0: i32, %arg1: i32) -> (i32, i32, i32, i32, i32) {
    %c0_i32 = arith.constant 0 : i32
    %c0_i32_0 = arith.constant 0 : i32
    %c0_i32_1 = arith.constant 0 : i32
    %c0_i32_2 = arith.constant 0 : i32
    return %arg0, %arg1, %c0_i32, %c0_i32_0, %c0_i32_1 : i32, i32, i32, i32, i32
  }
  func.func @transform_1(%arg0: i32, %arg1: i32) -> (i32, i32, i32, i32) {
    %c0_i32 = arith.constant 0 : i32
    %c0_i32_0 = arith.constant 0 : i32
    %c0_i32_1 = arith.constant 0 : i32
    %c0_i32_2 = arith.constant 0 : i32
    %c0_i32_3 = arith.constant 0 : i32
    return %c0_i32, %c0_i32_0, %c0_i32_1, %c0_i32_2 : i32, i32, i32, i32
  }
  func.func @transform_2(%arg0: i32, %arg1: i32) -> (i32, i32, i32) {
    %c0_i32 = arith.constant 0 : i32
    %c0_i32_0 = arith.constant 0 : i32
    return %arg0, %c0_i32, %arg1 : i32, i32, i32
  }
}

</mosaic_0001>

<llo_original>
// kernel: depthwise_separable_conv.1
$region0: #{depthwise_separable_conv.1}
  #allocation0 [shape = 'u32[]', space=smem, size = 0x4, offset = 0x4, fixed_abs, tag = 'smem constant byte address 0x4 - core index']
  #allocation1 [shape = 'u32[72,128]{1,0:T(1,128)}', space=vmem, size = 0x9000, scoped, tag = 'internal scratch']
  %s0 = inlined_call_operand.vmem [shape: f32[2,2,10,18,4], index: 0, kind: input, shape index: {}]
  %s1 = inlined_call_operand.vmem [shape: f32[3,3,8,4], index: 1, kind: input, shape index: {}]
  %s2 = inlined_call_operand.vmem [shape: f32[2,8,256], index: 2, kind: output, shape index: {}]
  %s3 = sld [smem:[#allocation0]]
  $region41: #{depthwise_separable_conv.1} parent=0
    _
  %s5 = ssub.s32 1, %s3
  %s6 = scalar_select 0, %s5, %s3
  loop: start=0, step=1, limit=6
  $region2: #{depthwise_separable_conv.1} parent=0 // loop_pre_header
    _
  $region3: #{depthwise_separable_conv.1} parent=0 // loop_header
    %s8 = sphi 0, %s12
    %p9 = scmp.ge.s32.totalorder %s8, 6
    %s15 = sphi 0, %s27
    %s16 = sphi 0, %s23
    %s17 = sphi 0, %s15
    %s18 = sphi 0, %s16
    %s19 = sphi 0, %s17
    %s20 = sphi 0, %s18
    %s32 = sphi 0, %s34
    %s35 = sphi 0, %s32
    %s36 = sphi 0, %s35
    %s52 = sphi 0, %s36
    %s56 = sphi 0, %s56
    %s58 = sphi 0, %s56
    %s59 = sphi 0, %s58
    %s73 = sphi 0, %s59
    %s81 = sphi 0, %s83
    %s84 = sphi 0, %s81
    %s85 = sphi 0, %s84
    %s101 = sphi 0, %s85
  $region4: #{depthwise_separable_conv.1} parent=0 // loop_header_branch
    %11 = sbr.rel (%p9) target = $region8
  $region5: #{depthwise_separable_conv.1} parent=0 // loop_body
    %s13 = ssub.s32 %s8, 1
    %s14 = ssub.s32 %s8, 2
    %s21 = sadd.s32 1, %s16
    %p22 = scmp.ge.s32.totalorder %s21, 2
    %s23 = scalar_select %p22, 0, %s21
    %s24 = sadd.s32 1, %s15
    %s25 = scalar_select %p22, %s24, %s15
    %p26 = scmp.ge.s32.totalorder %s25, 2
    %s27 = scalar_select %p26, 0, %s25
    %s28 = ssub.s32 %s15, %s27
    %s29 = ssub.s32 %s16, %s23
    %s30 = sor.u32 %s28, %s29
    %p31 = scmp.eq.s32.totalorder %s30, 0
    %s33 = sadd.s32 %s32, 1
    %s34 = scalar_select %p31, %s32, %s33
    %p37 = pneg %p31
    %p38 = scmp.eq.s32.totalorder %s8, 3
    %p39 = por %p37, %p38
    %p40 = scmp.ne.s32.totalorder %s32, %s35
    %p41 = scmp.eq.s32.totalorder %s8, 0
    %p42 = por %p40, %p41
    %p43 = scmp.ne.s32.totalorder %s32, %s35
    %p44 = scmp.eq.s32.totalorder %s13, 3
    %p45 = por %p43, %p44
    %p46 = scmp.ne.s32.totalorder %s35, %s36
    %p47 = scmp.eq.s32.totalorder %s13, 0
    %p48 = por %p46, %p47
    %p49 = scmp.ne.s32.totalorder %s35, %s36
    %p50 = scmp.eq.s32.totalorder %s14, 3
    %p51 = por %p49, %p50
    %p53 = scmp.ne.s32.totalorder %s36, %s52
    %p54 = scmp.eq.s32.totalorder %s14, 0
    %p55 = por %p53, %p54
    %s57 = sadd.s32 %s56, 1
    %p60 = scmp.eq.s32.totalorder %s8, 3
    %p61 = scmp.ne.s32.totalorder %s56, %s58
    %p62 = scmp.eq.s32.totalorder %s8, 0
    %p63 = por %p61, %p62
    %p64 = scmp.ne.s32.totalorder %s56, %s58
    %p65 = scmp.eq.s32.totalorder %s13, 3
    %p66 = por %p64, %p65
    %p67 = scmp.ne.s32.totalorder %s58, %s59
    %p68 = scmp.eq.s32.totalorder %s13, 0
    %p69 = por %p67, %p68
    %p70 = scmp.ne.s32.totalorder %s58, %s59
    %p71 = scmp.eq.s32.totalorder %s14, 3
    %p72 = por %p70, %p71
    %p74 = scmp.ne.s32.totalorder %s59, %s73
    %p75 = scmp.eq.s32.totalorder %s14, 0
    %p76 = por %p74, %p75
    %s77 = ssub.s32 %s15, %s27
    %s78 = ssub.s32 %s16, %s23
    %s79 = sor.u32 %s77, %s78
    %p80 = scmp.eq.s32.totalorder %s79, 0
    %s82 = sadd.s32 %s81, 1
    %s83 = scalar_select %p80, %s81, %s82
    %p86 = pneg %p80
    %p87 = scmp.eq.s32.totalorder %s8, 3
    %p88 = por %p86, %p87
    %p89 = scmp.ne.s32.totalorder %s81, %s84
    %p90 = scmp.eq.s32.totalorder %s8, 0
    %p91 = por %p89, %p90
    %p92 = scmp.ne.s32.totalorder %s81, %s84
    %p93 = scmp.eq.s32.totalorder %s13, 3
    %p94 = por %p92, %p93
    %p95 = scmp.ne.s32.totalorder %s84, %s85
    %p96 = scmp.eq.s32.totalorder %s13, 0
    %p97 = por %p95, %p96
    %p98 = scmp.ne.s32.totalorder %s84, %s85
    %p99 = scmp.eq.s32.totalorder %s14, 3
    %p100 = por %p98, %p99
    %p102 = scmp.ne.s32.totalorder %s85, %s101
    %p103 = scmp.eq.s32.totalorder %s14, 0
    %p104 = por %p102, %p103
    %p105 = scmp.le.s32.totalorder 1, %s8
    %p106 = scmp.lt.s32.totalorder %s8, 5
    %p107 = pnand %p105, %p106
    %p108 = pneg %p107
    // Predicated region
    $region9: #{depthwise_separable_conv.1} parent=5 // pred_check
      _
    $region10: #{depthwise_separable_conv.1} parent=5 // pred_check_branch
      %110 = sbr.rel (%p107) target = $region12
    $region11: #{depthwise_separable_conv.1} parent=5 // pred_region
      %s111 = ssub.s32 %s8, 1
      // Predicated region
      $region13: #{depthwise_separable_conv.1} parent=11 // pred_check
        %p112 = pneg %p69
      $region14: #{depthwise_separable_conv.1} parent=11 // pred_check_branch
        %114 = sbr.rel (%p112) target = $region16
      $region15: #{depthwise_separable_conv.1} parent=11 // pred_region
        _
      $region16: #{depthwise_separable_conv.1} parent=11 // pred_fallthru
        _
    $region12: #{depthwise_separable_conv.1} parent=5 // pred_fallthru
      _
    %p115 = scmp.lt.s32.totalorder %s8, 4
    // Predicated region
    $region17: #{depthwise_separable_conv.1} parent=5 // pred_check
      %p116 = pneg %p115
    $region18: #{depthwise_separable_conv.1} parent=5 // pred_check_branch
      %118 = sbr.rel (%p116) target = $region20
    $region19: #{depthwise_separable_conv.1} parent=5 // pred_region
      // Predicated region
      $region21: #{depthwise_separable_conv.1} parent=19 // pred_check
        %p119 = pneg %p42
      $region22: #{depthwise_separable_conv.1} parent=19 // pred_check_branch
        %121 = sbr.rel (%p119) target = $region24
      $region23: #{depthwise_separable_conv.1} parent=19 // pred_region
        %p122 = scmp.lt.s32.totalorder %s15, 1
        %s123 = scalar_select %p122, %s15, 1
        %p124 = scmp.lt.s32.totalorder %s16, 1
        %s125 = scalar_select %p124, %s16, 1
        %s126 = smul.addr %s125, 30
        %s127 = smul.addr %s123, 60
        %s128 = sadd.s32 %s126, %s127
        %s129 = smul.addr %s128, 8
        %s130 = scalar_lea.vmem %s0, %s129
      $region24: #{depthwise_separable_conv.1} parent=19 // pred_fallthru
        _
    $region20: #{depthwise_separable_conv.1} parent=5 // pred_fallthru
      _
    %p131 = scmp.le.s32.totalorder 1, %s8
    %p132 = scmp.lt.s32.totalorder %s8, 5
    %p133 = pnand %p131, %p132
    %p134 = pneg %p133
    // Predicated region
    $region25: #{depthwise_separable_conv.1} parent=5 // pred_check
      _
    $region26: #{depthwise_separable_conv.1} parent=5 // pred_check_branch
      %136 = sbr.rel (%p133) target = $region28
    $region27: #{depthwise_separable_conv.1} parent=5 // pred_region
      %s137 = ssub.s32 %s8, 1
      %p138 = scmp.lt.s32.totalorder %s17, 1
      %s139 = scalar_select %p138, %s17, 1
      %p140 = scmp.lt.s32.totalorder %s18, 1
      %s141 = scalar_select %p140, %s18, 1
      %s142 = smul.addr %s141, 30
      %s143 = smul.addr %s139, 60
      %s144 = sadd.s32 %s142, %s143
      %s145 = smul.addr %s144, 8
      %s146 = scalar_lea.vmem %s0, %s145
      %p147 = pneg %p48
      %p148 = pneg %p45
      %p149 = pneg %p69
      %p150 = pneg %p66
      %p151 = pneg %p97
      %p152 = pneg %p94
      %p153 = scmp.lt.s32.totalorder %s17, 1
      %s154 = scalar_select %p153, %s17, 1
      %p155 = scmp.lt.s32.totalorder %s18, 1
      %s156 = scalar_select %p155, %s18, 1
      %s157 = smul.addr %s154, 2
      %s158 = sadd.s32 %s156, %s157
      %s159 = smul.addr %s158, 8
      %s160 = scalar_lea.vmem %s2, %s159
      %p161 = scmp.lt.s32.totalorder %s17, 1
      %s162 = scalar_select %p161, %s17, 1
      %p163 = scmp.lt.s32.totalorder %s18, 1
      %s164 = scalar_select %p163, %s18, 1
      %s165 = smul.addr %s164, 30
      %s166 = smul.addr %s162, 60
      %s167 = sadd.s32 %s165, %s166
      %s168 = smul.addr %s167, 8
      %s169 = scalar_lea.vmem %s0, %s168
      %p170 = scmp.lt.s32.totalorder %s17, 1
      %s171 = scalar_select %p170, %s17, 1
      %p172 = scmp.lt.s32.totalorder %s18, 1
      %s173 = scalar_select %p172, %s18, 1
      %s174 = smul.addr %s171, 2
      %s175 = sadd.s32 %s173, %s174
      %s176 = smul.addr %s175, 8
      %s177 = scalar_lea.vmem %s2, %s176
      %v178 = vld [vmem:[%s169] sm:$0xff]
      %v179 = vld [vmem:[%s169 + $0x8] sm:$0xff]
      %v180 = vld [vmem:[%s169 + $0x18] sm:$0xff]
      %v181 = vld [vmem:[%s169 + $0x20] sm:$0xff]
      %v182 = vld [vmem:[%s169 + $0x30] sm:$0xff]
      %v183 = vld [vmem:[%s169 + $0x38] sm:$0xff]
      %v184 = vld [vmem:[%s169 + $0x48] sm:$0xff]
      %v185 = vld [vmem:[%s169 + $0x50] sm:$0xff]
      %v186 = vld [vmem:[%s169 + $0x60] sm:$0xff]
      %v187 = vld [vmem:[%s169 + $0x68] sm:$0xff]
      %v188 = vld [vmem:[%s169 + $0x78] sm:$0xff]
      %v189 = vld [vmem:[%s169 + $0x80] sm:$0xff]
      %v190 = vld [vmem:[%s169 + $0x90] sm:$0xff]
      %v191 = vld [vmem:[%s169 + $0x98] sm:$0xff]
      %v192 = vld [vmem:[%s169 + $0xa8] sm:$0xff]
      %v193 = vld [vmem:[%s169 + $0xb0] sm:$0xff]
      %v194 = vld [vmem:[%s1] sm:$0xff]
      %v195 = vld [vmem:[%s169 + $0x1] sm:$0xff]
      %v196 = vld [vmem:[%s169 + $0x9] sm:$0xff]
      %v197 = vld [vmem:[%s169 + $0x19] sm:$0xff]
      %v198 = vld [vmem:[%s169 + $0x21] sm:$0xff]
      %v199 = vld [vmem:[%s169 + $0x31] sm:$0xff]
      %v200 = vld [vmem:[%s169 + $0x39] sm:$0xff]
      %v201 = vld [vmem:[%s169 + $0x49] sm:$0xff]
      %v202 = vld [vmem:[%s169 + $0x51] sm:$0xff]
      %v203 = vld [vmem:[%s169 + $0x61] sm:$0xff]
      %v204 = vld [vmem:[%s169 + $0x69] sm:$0xff]
      %v205 = vld [vmem:[%s169 + $0x79] sm:$0xff]
      %v206 = vld [vmem:[%s169 + $0x81] sm:$0xff]
      %v207 = vld [vmem:[%s169 + $0x91] sm:$0xff]
      %v208 = vld [vmem:[%s169 + $0x99] sm:$0xff]
      %v209 = vld [vmem:[%s169 + $0xa9] sm:$0xff]
      %v210 = vld [vmem:[%s169 + $0xb1] sm:$0xff]
      %s211 = scalar_lea.vmem %s1, 8
      %v212 = vld [vmem:[%s211] sm:$0xff]
      %vm213 = vcmask 31744
      %v215 = vsel %vm213, %v212, 0
      %v218 = vsel %vm213, %v195, 0
      %v221 = vsel %vm213, %v196, 0
      %v224 = vsel %vm213, %v197, 0
      %v227 = vsel %vm213, %v198, 0
      %v230 = vsel %vm213, %v199, 0
      %v233 = vsel %vm213, %v200, 0
      %v236 = vsel %vm213, %v201, 0
      %v239 = vsel %vm213, %v202, 0
      %v242 = vsel %vm213, %v203, 0
      %v245 = vsel %vm213, %v204, 0
      %v248 = vsel %vm213, %v205, 0
      %v251 = vsel %vm213, %v206, 0
      %v254 = vsel %vm213, %v207, 0
      %v257 = vsel %vm213, %v208, 0
      %v260 = vsel %vm213, %v209, 0
      %v263 = vsel %vm213, %v210, 0
      %265 = vmatpush.xpose.msra.mxu0 %v263
      %266 = vmatpush.xpose.msra.mxu0 %v260
      %267 = vmatpush.xpose.msra.mxu0 %v257
      %268 = vmatpush.xpose.msra.mxu0 %v254
      %269 = vmatpush.xpose.msra.mxu0 %v251
      %270 = vmatpush.xpose.msra.mxu0 %v248
      %271 = vmatpush.xpose.msra.mxu0 %v245
      %272 = vmatpush.xpose.msra.mxu0 %v242
      %273 = vmatpush.xpose.msra.mxu0 %v239
      %274 = vmatpush.xpose.msra.mxu0 %v236
      %275 = vmatpush.xpose.msra.mxu0 %v233
      %276 = vmatpush.xpose.msra.mxu0 %v230
      %277 = vmatpush.xpose.msra.mxu0 %v227
      %278 = vmatpush.xpose.msra.mxu0 %v224
      %279 = vmatpush.xpose.msra.mxu0 %v221
      %280 = vmatpush.xpose.msra.mxu0 %v218
      %281 = vmatmul.f32.gmra.mxu0 %v215
      %v282 = vpop.f32.mrf.mxu0
      %v283 = vadd.f32 0.0, %v282
      %284 = vdwg.mxu0
      %v286 = vsel %vm213, %v194, 0
      %v289 = vsel %vm213, %v178, 0
      %v292 = vsel %vm213, %v179, 0
      %v295 = vsel %vm213, %v180, 0
      %v298 = vsel %vm213, %v181, 0
      %v301 = vsel %vm213, %v182, 0
      %v304 = vsel %vm213, %v183, 0
      %v307 = vsel %vm213, %v184, 0
      %v310 = vsel %vm213, %v185, 0
      %v313 = vsel %vm213, %v186, 0
      %v316 = vsel %vm213, %v187, 0
      %v319 = vsel %vm213, %v188, 0
      %v322 = vsel %vm213, %v189, 0
      %v325 = vsel %vm213, %v190, 0
      %v328 = vsel %vm213, %v191, 0
      %v331 = vsel %vm213, %v192, 0
      %v334 = vsel %vm213, %v193, 0
      %336 = vmatpush.xpose.msra.mxu0 %v334
      %337 = vmatpush.xpose.msra.mxu0 %v331
      %338 = vmatpush.xpose.msra.mxu0 %v328
      %339 = vmatpush.xpose.msra.mxu0 %v325
      %340 = vmatpush.xpose.msra.mxu0 %v322
      %341 = vmatpush.xpose.msra.mxu0 %v319
      %342 = vmatpush.xpose.msra.mxu0 %v316
      %343 = vmatpush.xpose.msra.mxu0 %v313
      %344 = vmatpush.xpose.msra.mxu0 %v310
      %345 = vmatpush.xpose.msra.mxu0 %v307
      %346 = vmatpush.xpose.msra.mxu0 %v304
      %347 = vmatpush.xpose.msra.mxu0 %v301
      %348 = vmatpush.xpose.msra.mxu0 %v298
      %349 = vmatpush.xpose.msra.mxu0 %v295
      %350 = vmatpush.xpose.msra.mxu0 %v292
      %351 = vmatpush.xpose.msra.mxu0 %v289
      %352 = vmatmul.f32.gmra.mxu0 %v286
      %v353 = vpop.f32.mrf.mxu0
      %v354 = vadd.f32 %v283, %v353
      %355 = vdwg.mxu0
      %v356 = vld [vmem:[%s169 + $0x2] sm:$0xff]
      %v357 = vld [vmem:[%s169 + $0xa] sm:$0xff]
      %v358 = vld [vmem:[%s169 + $0x1a] sm:$0xff]
      %v359 = vld [vmem:[%s169 + $0x22] sm:$0xff]
      %v360 = vld [vmem:[%s169 + $0x32] sm:$0xff]
      %v361 = vld [vmem:[%s169 + $0x3a] sm:$0xff]
      %v362 = vld [vmem:[%s169 + $0x4a] sm:$0xff]
      %v363 = vld [vmem:[%s169 + $0x52] sm:$0xff]
      %v364 = vld [vmem:[%s169 + $0x62] sm:$0xff]
      %v365 = vld [vmem:[%s169 + $0x6a] sm:$0xff]
      %v366 = vld [vmem:[%s169 + $0x7a] sm:$0xff]
      %v367 = vld [vmem:[%s169 + $0x82] sm:$0xff]
      %v368 = vld [vmem:[%s169 + $0x92] sm:$0xff]
      %v369 = vld [vmem:[%s169 + $0x9a] sm:$0xff]
      %v370 = vld [vmem:[%s169 + $0xaa] sm:$0xff]
      %v371 = vld [vmem:[%s169 + $0xb2] sm:$0xff]
      %s372 = scalar_lea.vmem %s1, 16
      %v373 = vld [vmem:[%s372] sm:$0xff]
      %v375 = vsel %vm213, %v373, 0
      %v378 = vsel %vm213, %v356, 0
      %v381 = vsel %vm213, %v357, 0
      %v384 = vsel %vm213, %v358, 0
      %v387 = vsel %vm213, %v359, 0
      %v390 = vsel %vm213, %v360, 0
      %v393 = vsel %vm213, %v361, 0
      %v396 = vsel %vm213, %v362, 0
      %v399 = vsel %vm213, %v363, 0
      %v402 = vsel %vm213, %v364, 0
      %v405 = vsel %vm213, %v365, 0
      %v408 = vsel %vm213, %v366, 0
      %v411 = vsel %vm213, %v367, 0
      %v414 = vsel %vm213, %v368, 0
      %v417 = vsel %vm213, %v369, 0
      %v420 = vsel %vm213, %v370, 0
      %v423 = vsel %vm213, %v371, 0
      %425 = vmatpush.xpose.msra.mxu0 %v423
      %426 = vmatpush.xpose.msra.mxu0 %v420
      %427 = vmatpush.xpose.msra.mxu0 %v417
      %428 = vmatpush.xpose.msra.mxu0 %v414
      %429 = vmatpush.xpose.msra.mxu0 %v411
      %430 = vmatpush.xpose.msra.mxu0 %v408
      %431 = vmatpush.xpose.msra.mxu0 %v405
      %432 = vmatpush.xpose.msra.mxu0 %v402
      %433 = vmatpush.xpose.msra.mxu0 %v399
      %434 = vmatpush.xpose.msra.mxu0 %v396
      %435 = vmatpush.xpose.msra.mxu0 %v393
      %436 = vmatpush.xpose.msra.mxu0 %v390
      %437 = vmatpush.xpose.msra.mxu0 %v387
      %438 = vmatpush.xpose.msra.mxu0 %v384
      %439 = vmatpush.xpose.msra.mxu0 %v381
      %440 = vmatpush.xpose.msra.mxu0 %v378
      %441 = vmatmul.f32.gmra.mxu0 %v375
      %v442 = vpop.f32.mrf.mxu0
      %v443 = vadd.f32 0.0, %v442
      %444 = vdwg.mxu0
      %v445 = vadd.f32 %v354, %v443
      %s446 = scalar_lea.vmem %s169, 24
      %v447 = vld [vmem:[%s446] sm:$0xff]
      %v448 = vld [vmem:[%s446 + $0x8] sm:$0xff]
      %v449 = vld [vmem:[%s446 + $0x18] sm:$0xff]
      %v450 = vld [vmem:[%s446 + $0x20] sm:$0xff]
      %v451 = vld [vmem:[%s446 + $0x30] sm:$0xff]
      %v452 = vld [vmem:[%s446 + $0x38] sm:$0xff]
      %v453 = vld [vmem:[%s446 + $0x48] sm:$0xff]
      %v454 = vld [vmem:[%s446 + $0x50] sm:$0xff]
      %v455 = vld [vmem:[%s446 + $0x60] sm:$0xff]
      %v456 = vld [vmem:[%s446 + $0x68] sm:$0xff]
      %v457 = vld [vmem:[%s446 + $0x78] sm:$0xff]
      %v458 = vld [vmem:[%s446 + $0x80] sm:$0xff]
      %v459 = vld [vmem:[%s446 + $0x90] sm:$0xff]
      %v460 = vld [vmem:[%s446 + $0x98] sm:$0xff]
      %v461 = vld [vmem:[%s446 + $0xa8] sm:$0xff]
      %v462 = vld [vmem:[%s446 + $0xb0] sm:$0xff]
      %s463 = scalar_lea.vmem %s1, 24
      %v464 = vld [vmem:[%s463] sm:$0xff]
      %v466 = vsel %vm213, %v464, 0
      %v469 = vsel %vm213, %v447, 0
      %v472 = vsel %vm213, %v448, 0
      %v475 = vsel %vm213, %v449, 0
      %v478 = vsel %vm213, %v450, 0
      %v481 = vsel %vm213, %v451, 0
      %v484 = vsel %vm213, %v452, 0
      %v487 = vsel %vm213, %v453, 0
      %v490 = vsel %vm213, %v454, 0
      %v493 = vsel %vm213, %v455, 0
      %v496 = vsel %vm213, %v456, 0
      %v499 = vsel %vm213, %v457, 0
      %v502 = vsel %vm213, %v458, 0
      %v505 = vsel %vm213, %v459, 0
      %v508 = vsel %vm213, %v460, 0
      %v511 = vsel %vm213, %v461, 0
      %v514 = vsel %vm213, %v462, 0
      %516 = vmatpush.xpose.msra.mxu0 %v514
      %517 = vmatpush.xpose.msra.mxu0 %v511
      %518 = vmatpush.xpose.msra.mxu0 %v508
      %519 = vmatpush.xpose.msra.mxu0 %v505
      %520 = vmatpush.xpose.msra.mxu0 %v502
      %521 = vmatpush.xpose.msra.mxu0 %v499
      %522 = vmatpush.xpose.msra.mxu0 %v496
      %523 = vmatpush.xpose.msra.mxu0 %v493
      %524 = vmatpush.xpose.msra.mxu0 %v490
      %525 = vmatpush.xpose.msra.mxu0 %v487
      %526 = vmatpush.xpose.msra.mxu0 %v484
      %527 = vmatpush.xpose.msra.mxu0 %v481
      %528 = vmatpush.xpose.msra.mxu0 %v478
      %529 = vmatpush.xpose.msra.mxu0 %v475
      %530 = vmatpush.xpose.msra.mxu0 %v472
      %531 = vmatpush.xpose.msra.mxu0 %v469
      %532 = vmatmul.f32.gmra.mxu0 %v466
      %v533 = vpop.f32.mrf.mxu0
      %v534 = vadd.f32 0.0, %v533
      %535 = vdwg.mxu0
      %v536 = vadd.f32 %v445, %v534
      %v537 = vld [vmem:[%s446 + $0x1] sm:$0xff]
      %v538 = vld [vmem:[%s446 + $0x9] sm:$0xff]
      %v539 = vld [vmem:[%s446 + $0x19] sm:$0xff]
      %v540 = vld [vmem:[%s446 + $0x21] sm:$0xff]
      %v541 = vld [vmem:[%s446 + $0x31] sm:$0xff]
      %v542 = vld [vmem:[%s446 + $0x39] sm:$0xff]
      %v543 = vld [vmem:[%s446 + $0x49] sm:$0xff]
      %v544 = vld [vmem:[%s446 + $0x51] sm:$0xff]
      %v545 = vld [vmem:[%s446 + $0x61] sm:$0xff]
      %v546 = vld [vmem:[%s446 + $0x69] sm:$0xff]
      %v547 = vld [vmem:[%s446 + $0x79] sm:$0xff]
      %v548 = vld [vmem:[%s446 + $0x81] sm:$0xff]
      %v549 = vld [vmem:[%s446 + $0x91] sm:$0xff]
      %v550 = vld [vmem:[%s446 + $0x99] sm:$0xff]
      %v551 = vld [vmem:[%s446 + $0xa9] sm:$0xff]
      %v552 = vld [vmem:[%s446 + $0xb1] sm:$0xff]
      %s553 = scalar_lea.vmem %s1, 32
      %v554 = vld [vmem:[%s553] sm:$0xff]
      %v556 = vsel %vm213, %v554, 0
      %v559 = vsel %vm213, %v537, 0
      %v562 = vsel %vm213, %v538, 0
      %v565 = vsel %vm213, %v539, 0
      %v568 = vsel %vm213, %v540, 0
      %v571 = vsel %vm213, %v541, 0
      %v574 = vsel %vm213, %v542, 0
      %v577 = vsel %vm213, %v543, 0
      %v580 = vsel %vm213, %v544, 0
      %v583 = vsel %vm213, %v545, 0
      %v586 = vsel %vm213, %v546, 0
      %v589 = vsel %vm213, %v547, 0
      %v592 = vsel %vm213, %v548, 0
      %v595 = vsel %vm213, %v549, 0
      %v598 = vsel %vm213, %v550, 0
      %v601 = vsel %vm213, %v551, 0
      %v604 = vsel %vm213, %v552, 0
      %606 = vmatpush.xpose.msra.mxu0 %v604
      %607 = vmatpush.xpose.msra.mxu0 %v601
      %608 = vmatpush.xpose.msra.mxu0 %v598
      %609 = vmatpush.xpose.msra.mxu0 %v595
      %610 = vmatpush.xpose.msra.mxu0 %v592
      %611 = vmatpush.xpose.msra.mxu0 %v589
      %612 = vmatpush.xpose.msra.mxu0 %v586
      %613 = vmatpush.xpose.msra.mxu0 %v583
      %614 = vmatpush.xpose.msra.mxu0 %v580
      %615 = vmatpush.xpose.msra.mxu0 %v577
      %616 = vmatpush.xpose.msra.mxu0 %v574
      %617 = vmatpush.xpose.msra.mxu0 %v571
      %618 = vmatpush.xpose.msra.mxu0 %v568
      %619 = vmatpush.xpose.msra.mxu0 %v565
      %620 = vmatpush.xpose.msra.mxu0 %v562
      %621 = vmatpush.xpose.msra.mxu0 %v559
      %622 = vmatmul.f32.gmra.mxu0 %v556
      %v623 = vpop.f32.mrf.mxu0
      %v624 = vadd.f32 0.0, %v623
      %625 = vdwg.mxu0
      %v626 = vadd.f32 %v536, %v624
      %v627 = vld [vmem:[%s446 + $0x2] sm:$0xff]
      %v628 = vld [vmem:[%s446 + $0xa] sm:$0xff]
      %v629 = vld [vmem:[%s446 + $0x1a] sm:$0xff]
      %v630 = vld [vmem:[%s446 + $0x22] sm:$0xff]
      %v631 = vld [vmem:[%s446 + $0x32] sm:$0xff]
      %v632 = vld [vmem:[%s446 + $0x3a] sm:$0xff]
      %v633 = vld [vmem:[%s446 + $0x4a] sm:$0xff]
      %v634 = vld [vmem:[%s446 + $0x52] sm:$0xff]
      %v635 = vld [vmem:[%s446 + $0x62] sm:$0xff]
      %v636 = vld [vmem:[%s446 + $0x6a] sm:$0xff]
      %v637 = vld [vmem:[%s446 + $0x7a] sm:$0xff]
      %v638 = vld [vmem:[%s446 + $0x82] sm:$0xff]
      %v639 = vld [vmem:[%s446 + $0x92] sm:$0xff]
      %v640 = vld [vmem:[%s446 + $0x9a] sm:$0xff]
      %v641 = vld [vmem:[%s446 + $0xaa] sm:$0xff]
      %v642 = vld [vmem:[%s446 + $0xb2] sm:$0xff]
      %s643 = scalar_lea.vmem %s1, 40
      %v644 = vld [vmem:[%s643] sm:$0xff]
      %v646 = vsel %vm213, %v644, 0
      %v649 = vsel %vm213, %v627, 0
      %v652 = vsel %vm213, %v628, 0
      %v655 = vsel %vm213, %v629, 0
      %v658 = vsel %vm213, %v630, 0
      %v661 = vsel %vm213, %v631, 0
      %v664 = vsel %vm213, %v632, 0
      %v667 = vsel %vm213, %v633, 0
      %v670 = vsel %vm213, %v634, 0
      %v673 = vsel %vm213, %v635, 0
      %v676 = vsel %vm213, %v636, 0
      %v679 = vsel %vm213, %v637, 0
      %v682 = vsel %vm213, %v638, 0
      %v685 = vsel %vm213, %v639, 0
      %v688 = vsel %vm213, %v640, 0
      %v691 = vsel %vm213, %v641, 0
      %v694 = vsel %vm213, %v642, 0
      %696 = vmatpush.xpose.msra.mxu0 %v694
      %697 = vmatpush.xpose.msra.mxu0 %v691
      %698 = vmatpush.xpose.msra.mxu0 %v688
      %699 = vmatpush.xpose.msra.mxu0 %v685
      %700 = vmatpush.xpose.msra.mxu0 %v682
      %701 = vmatpush.xpose.msra.mxu0 %v679
      %702 = vmatpush.xpose.msra.mxu0 %v676
      %703 = vmatpush.xpose.msra.mxu0 %v673
      %704 = vmatpush.xpose.msra.mxu0 %v670
      %705 = vmatpush.xpose.msra.mxu0 %v667
      %706 = vmatpush.xpose.msra.mxu0 %v664
      %707 = vmatpush.xpose.msra.mxu0 %v661
      %708 = vmatpush.xpose.msra.mxu0 %v658
      %709 = vmatpush.xpose.msra.mxu0 %v655
      %710 = vmatpush.xpose.msra.mxu0 %v652
      %711 = vmatpush.xpose.msra.mxu0 %v649
      %712 = vmatmul.f32.gmra.mxu0 %v646
      %v713 = vpop.f32.mrf.mxu0
      %v714 = vadd.f32 0.0, %v713
      %715 = vdwg.mxu0
      %v716 = vadd.f32 %v626, %v714
      %s717 = scalar_lea.vmem %s169, 48
      %v718 = vld [vmem:[%s717] sm:$0xff]
      %v719 = vld [vmem:[%s717 + $0x8] sm:$0xff]
      %v720 = vld [vmem:[%s717 + $0x18] sm:$0xff]
      %v721 = vld [vmem:[%s717 + $0x20] sm:$0xff]
      %v722 = vld [vmem:[%s717 + $0x30] sm:$0xff]
      %v723 = vld [vmem:[%s717 + $0x38] sm:$0xff]
      %v724 = vld [vmem:[%s717 + $0x48] sm:$0xff]
      %v725 = vld [vmem:[%s717 + $0x50] sm:$0xff]
      %v726 = vld [vmem:[%s717 + $0x60] sm:$0xff]
      %v727 = vld [vmem:[%s717 + $0x68] sm:$0xff]
      %v728 = vld [vmem:[%s717 + $0x78] sm:$0xff]
      %v729 = vld [vmem:[%s717 + $0x80] sm:$0xff]
      %v730 = vld [vmem:[%s717 + $0x90] sm:$0xff]
      %v731 = vld [vmem:[%s717 + $0x98] sm:$0xff]
      %v732 = vld [vmem:[%s717 + $0xa8] sm:$0xff]
      %v733 = vld [vmem:[%s717 + $0xb0] sm:$0xff]
      %s734 = scalar_lea.vmem %s1, 48
      %v735 = vld [vmem:[%s734] sm:$0xff]
      %v737 = vsel %vm213, %v735, 0
      %v740 = vsel %vm213, %v718, 0
      %v743 = vsel %vm213, %v719, 0
      %v746 = vsel %vm213, %v720, 0
      %v749 = vsel %vm213, %v721, 0
      %v752 = vsel %vm213, %v722, 0
      %v755 = vsel %vm213, %v723, 0
      %v758 = vsel %vm213, %v724, 0
      %v761 = vsel %vm213, %v725, 0
      %v764 = vsel %vm213, %v726, 0
      %v767 = vsel %vm213, %v727, 0
      %v770 = vsel %vm213, %v728, 0
      %v773 = vsel %vm213, %v729, 0
      %v776 = vsel %vm213, %v730, 0
      %v779 = vsel %vm213, %v731, 0
      %v782 = vsel %vm213, %v732, 0
      %v785 = vsel %vm213, %v733, 0
      %787 = vmatpush.xpose.msra.mxu0 %v785
      %788 = vmatpush.xpose.msra.mxu0 %v782
      %789 = vmatpush.xpose.msra.mxu0 %v779
      %790 = vmatpush.xpose.msra.mxu0 %v776
      %791 = vmatpush.xpose.msra.mxu0 %v773
      %792 = vmatpush.xpose.msra.mxu0 %v770
      %793 = vmatpush.xpose.msra.mxu0 %v767
      %794 = vmatpush.xpose.msra.mxu0 %v764
      %795 = vmatpush.xpose.msra.mxu0 %v761
      %796 = vmatpush.xpose.msra.mxu0 %v758
      %797 = vmatpush.xpose.msra.mxu0 %v755
      %798 = vmatpush.xpose.msra.mxu0 %v752
      %799 = vmatpush.xpose.msra.mxu0 %v749
      %800 = vmatpush.xpose.msra.mxu0 %v746
      %801 = vmatpush.xpose.msra.mxu0 %v743
      %802 = vmatpush.xpose.msra.mxu0 %v740
      %803 = vmatmul.f32.gmra.mxu0 %v737
      %v804 = vpop.f32.mrf.mxu0
      %v805 = vadd.f32 0.0, %v804
      %806 = vdwg.mxu0
      %v807 = vadd.f32 %v716, %v805
      %v808 = vld [vmem:[%s717 + $0x1] sm:$0xff]
      %v809 = vld [vmem:[%s717 + $0x9] sm:$0xff]
      %v810 = vld [vmem:[%s717 + $0x19] sm:$0xff]
      %v811 = vld [vmem:[%s717 + $0x21] sm:$0xff]
      %v812 = vld [vmem:[%s717 + $0x31] sm:$0xff]
      %v813 = vld [vmem:[%s717 + $0x39] sm:$0xff]
      %v814 = vld [vmem:[%s717 + $0x49] sm:$0xff]
      %v815 = vld [vmem:[%s717 + $0x51] sm:$0xff]
      %v816 = vld [vmem:[%s717 + $0x61] sm:$0xff]
      %v817 = vld [vmem:[%s717 + $0x69] sm:$0xff]
      %v818 = vld [vmem:[%s717 + $0x79] sm:$0xff]
      %v819 = vld [vmem:[%s717 + $0x81] sm:$0xff]
      %v820 = vld [vmem:[%s717 + $0x91] sm:$0xff]
      %v821 = vld [vmem:[%s717 + $0x99] sm:$0xff]
      %v822 = vld [vmem:[%s717 + $0xa9] sm:$0xff]
      %v823 = vld [vmem:[%s717 + $0xb1] sm:$0xff]
      %s824 = scalar_lea.vmem %s1, 56
      %v825 = vld [vmem:[%s824] sm:$0xff]
      %v827 = vsel %vm213, %v825, 0
      %v830 = vsel %vm213, %v808, 0
      %v833 = vsel %vm213, %v809, 0
      %v836 = vsel %vm213, %v810, 0
      %v839 = vsel %vm213, %v811, 0
      %v842 = vsel %vm213, %v812, 0
      %v845 = vsel %vm213, %v813, 0
      %v848 = vsel %vm213, %v814, 0
      %v851 = vsel %vm213, %v815, 0
      %v854 = vsel %vm213, %v816, 0
      %v857 = vsel %vm213, %v817, 0
      %v860 = vsel %vm213, %v818, 0
      %v863 = vsel %vm213, %v819, 0
      %v866 = vsel %vm213, %v820, 0
      %v869 = vsel %vm213, %v821, 0
      %v872 = vsel %vm213, %v822, 0
      %v875 = vsel %vm213, %v823, 0
      %877 = vmatpush.xpose.msra.mxu0 %v875
      %878 = vmatpush.xpose.msra.mxu0 %v872
      %879 = vmatpush.xpose.msra.mxu0 %v869
      %880 = vmatpush.xpose.msra.mxu0 %v866
      %881 = vmatpush.xpose.msra.mxu0 %v863
      %882 = vmatpush.xpose.msra.mxu0 %v860
      %883 = vmatpush.xpose.msra.mxu0 %v857
      %884 = vmatpush.xpose.msra.mxu0 %v854
      %885 = vmatpush.xpose.msra.mxu0 %v851
      %886 = vmatpush.xpose.msra.mxu0 %v848
      %887 = vmatpush.xpose.msra.mxu0 %v845
      %888 = vmatpush.xpose.msra.mxu0 %v842
      %889 = vmatpush.xpose.msra.mxu0 %v839
      %890 = vmatpush.xpose.msra.mxu0 %v836
      %891 = vmatpush.xpose.msra.mxu0 %v833
      %892 = vmatpush.xpose.msra.mxu0 %v830
      %893 = vmatmul.f32.gmra.mxu0 %v827
      %v894 = vpop.f32.mrf.mxu0
      %v895 = vadd.f32 0.0, %v894
      %896 = vdwg.mxu0
      %v897 = vadd.f32 %v807, %v895
      %v898 = vld [vmem:[%s717 + $0x2] sm:$0xff]
      %v899 = vld [vmem:[%s717 + $0xa] sm:$0xff]
      %v900 = vld [vmem:[%s717 + $0x1a] sm:$0xff]
      %v901 = vld [vmem:[%s717 + $0x22] sm:$0xff]
      %v902 = vld [vmem:[%s717 + $0x32] sm:$0xff]
      %v903 = vld [vmem:[%s717 + $0x3a] sm:$0xff]
      %v904 = vld [vmem:[%s717 + $0x4a] sm:$0xff]
      %v905 = vld [vmem:[%s717 + $0x52] sm:$0xff]
      %v906 = vld [vmem:[%s717 + $0x62] sm:$0xff]
      %v907 = vld [vmem:[%s717 + $0x6a] sm:$0xff]
      %v908 = vld [vmem:[%s717 + $0x7a] sm:$0xff]
      %v909 = vld [vmem:[%s717 + $0x82] sm:$0xff]
      %v910 = vld [vmem:[%s717 + $0x92] sm:$0xff]
      %v911 = vld [vmem:[%s717 + $0x9a] sm:$0xff]
      %v912 = vld [vmem:[%s717 + $0xaa] sm:$0xff]
      %v913 = vld [vmem:[%s717 + $0xb2] sm:$0xff]
      %s914 = scalar_lea.vmem %s1, 64
      %v915 = vld [vmem:[%s914] sm:$0xff]
      %v917 = vsel %vm213, %v915, 0
      %v920 = vsel %vm213, %v898, 0
      %v923 = vsel %vm213, %v899, 0
      %v926 = vsel %vm213, %v900, 0
      %v929 = vsel %vm213, %v901, 0
      %v932 = vsel %vm213, %v902, 0
      %v935 = vsel %vm213, %v903, 0
      %v938 = vsel %vm213, %v904, 0
      %v941 = vsel %vm213, %v905, 0
      %v944 = vsel %vm213, %v906, 0
      %v947 = vsel %vm213, %v907, 0
      %v950 = vsel %vm213, %v908, 0
      %v953 = vsel %vm213, %v909, 0
      %v956 = vsel %vm213, %v910, 0
      %v959 = vsel %vm213, %v911, 0
      %v962 = vsel %vm213, %v912, 0
      %v965 = vsel %vm213, %v913, 0
      %967 = vmatpush.xpose.msra.mxu0 %v965
      %968 = vmatpush.xpose.msra.mxu0 %v962
      %969 = vmatpush.xpose.msra.mxu0 %v959
      %970 = vmatpush.xpose.msra.mxu0 %v956
      %971 = vmatpush.xpose.msra.mxu0 %v953
      %972 = vmatpush.xpose.msra.mxu0 %v950
      %973 = vmatpush.xpose.msra.mxu0 %v947
      %974 = vmatpush.xpose.msra.mxu0 %v944
      %975 = vmatpush.xpose.msra.mxu0 %v941
      %976 = vmatpush.xpose.msra.mxu0 %v938
      %977 = vmatpush.xpose.msra.mxu0 %v935
      %978 = vmatpush.xpose.msra.mxu0 %v932
      %979 = vmatpush.xpose.msra.mxu0 %v929
      %980 = vmatpush.xpose.msra.mxu0 %v926
      %981 = vmatpush.xpose.msra.mxu0 %v923
      %982 = vmatpush.xpose.msra.mxu0 %v920
      %983 = vmatmul.f32.gmra.mxu0 %v917
      %v984 = vpop.f32.mrf.mxu0
      %v985 = vadd.f32 0.0, %v984
      %986 = vdwg.mxu0
      %v987 = vadd.f32 %v897, %v985
      %988 = vst [vmem:[%s177] sm:$0xff] %v987
      %p989 = scmp.lt.s32.totalorder %s17, 1
      %s990 = scalar_select %p989, %s17, 1
      %p991 = scmp.lt.s32.totalorder %s18, 1
      %s992 = scalar_select %p991, %s18, 1
      %s993 = smul.addr %s990, 2
      %s994 = sadd.s32 %s992, %s993
      %s995 = smul.addr %s994, 8
      %s996 = scalar_lea.vmem %s2, %s995
      // Predicated region
      $region29: #{depthwise_separable_conv.1} parent=27 // pred_check
        %p997 = pneg %p94
      $region30: #{depthwise_separable_conv.1} parent=27 // pred_check_branch
        %999 = sbr.rel (%p997) target = $region32
      $region31: #{depthwise_separable_conv.1} parent=27 // pred_region
        _
      $region32: #{depthwise_separable_conv.1} parent=27 // pred_fallthru
        _
    $region28: #{depthwise_separable_conv.1} parent=5 // pred_fallthru
      _
    %p1000 = scmp.le.s32.totalorder 2, %s8
    // Predicated region
    $region33: #{depthwise_separable_conv.1} parent=5 // pred_check
      %p1001 = pneg %p1000
    $region34: #{depthwise_separable_conv.1} parent=5 // pred_check_branch
      %1003 = sbr.rel (%p1001) target = $region36
    $region35: #{depthwise_separable_conv.1} parent=5 // pred_region
      %s1004 = ssub.s32 %s8, 2
      // Predicated region
      $region37: #{depthwise_separable_conv.1} parent=35 // pred_check
        %p1005 = pneg %p100
      $region38: #{depthwise_separable_conv.1} parent=35 // pred_check_branch
        %1007 = sbr.rel (%p1005) target = $region40
      $region39: #{depthwise_separable_conv.1} parent=35 // pred_region
        %p1008 = scmp.lt.s32.totalorder %s19, 1
        %s1009 = scalar_select %p1008, %s19, 1
        %p1010 = scmp.lt.s32.totalorder %s20, 1
        %s1011 = scalar_select %p1010, %s20, 1
        %s1012 = smul.addr %s1009, 2
        %s1013 = sadd.s32 %s1011, %s1012
        %s1014 = smul.addr %s1013, 8
        %s1015 = scalar_lea.vmem %s2, %s1014
      $region40: #{depthwise_separable_conv.1} parent=35 // pred_fallthru
        _
    $region36: #{depthwise_separable_conv.1} parent=5 // pred_fallthru
      _
  $region6: #{depthwise_separable_conv.1} parent=0 // loop_footer
    %s12 = sadd.s32 1, %s8
  $region7: #{depthwise_separable_conv.1} parent=0 // loop_footer_branch
    %7 = sbr.rel target = $region3
  $region8: #{depthwise_separable_conv.1} parent=0 // loop_exit
    _

</llo_original>
